<compile_context>
chip_gen: v5e
topology: v5e:2x2
jax: 0.10.0
libtpu: 0.0.40
codegen_flags: <defaults>
</compile_context>

<pallas_src>
import functools

import jax
import jax.numpy as jnp
from jax import lax
from jax.experimental import pallas as pl
from jax.experimental.pallas import tpu as pltpu

LANE = 128          # lane width: last dim of every block
ROWG = 512          # rows per in-kernel chunk (256 KiB f32) -> flat VMEM temporaries
MAX_TM = 4096       # rows per grid block: 4096*128*4B = 2 MiB per f32 input block
_SENTINEL = -1e4    # logit sentinel: exp(-1e4) underflows to 0 -> exactly zero loss


def _round_up(x, m):
    return ((x + m - 1) // m) * m


def _tile_math(x, t, alpha, gamma):
    """Elementwise focal loss + positive indicator on f32 tiles.

    Uses the binary-target identities pt == sigmoid(x*(1-2t)) and
    BCE-with-logits(x, t) == softplus(x*(1-2t)), so a single exp / log1p /
    reciprocal serves the whole computation (targets are {0,1}-valued, as the
    focal-loss formulation assumes)."""
    s = x * (1.0 - 2.0 * t)                 # = x if t==0, -x if t==1
    e = jnp.exp(-jnp.abs(s))
    d = 1.0 + e
    r = pl.reciprocal(d, approx=True)       # EUP slot (frees VALU ops)
    r = r * (2.0 - d * r)                   # one Newton-Raphson step -> ~f32 exact
    pt = jnp.where(s >= 0.0, r, e * r)      # == sigmoid(s) == pt of the reference

    # Specialize pt**gamma to repeated multiplies for small integer gamma
    # (default gamma=2.0) -> no log+exp pow on the single EUP slot.
    if float(gamma) == float(int(gamma)) and 0 <= int(gamma) <= 4:
        g = int(gamma)
        if g == 0:
            ptg = jnp.ones_like(pt)
        else:
            ptg = pt
            for _ in range(g - 1):
                ptg = ptg * pt
    else:
        ptg = jnp.power(pt, gamma)

    fw = ((1.0 - alpha) + (2.0 * alpha - 1.0) * t) * ptg   # == alpha*t + (1-alpha)*(1-t)
    bce = jnp.maximum(s, 0.0) + jnp.log1p(e)               # stable BCE-with-logits
    loss = bce * fw
    pos = (t > 0.0).astype(jnp.float32)
    return loss, pos


def _focal_loss_partials_kernel(pred_ref, tgt_ref, loss_out_ref, pos_out_ref, *,
                                alpha, gamma, rowg, last_tile_valid_rows):
    """One grid step: focal loss on a (TM, LANE) block, folded into (8, LANE)
    partial sums for the loss and the positive count.  Rows beyond the logical
    array (possible only on the last grid step) are masked with sentinels."""
    tm = pred_ref.shape[0]
    n_groups = tm // rowg
    zeros8 = jnp.zeros((8, LANE), jnp.float32)

    def load(r0):
        x = pred_ref[pl.ds(r0, rowg), :].astype(jnp.float32)
        t = tgt_ref[pl.ds(r0, rowg), :].astype(jnp.float32)
        return x, t

    def accumulate(x, t, lacc, pacc):
        loss, pos = _tile_math(x, t, alpha, gamma)
        lacc = lacc + jnp.sum(loss.reshape(rowg // 8, 8, LANE), axis=0)
        pacc = pacc + jnp.sum(pos.reshape(rowg // 8, 8, LANE), axis=0)
        return lacc, pacc

    def full_block():
        def group(g, carry):
            r0 = pl.multiple_of(g * rowg, rowg)
            x, t = load(r0)
            return accumulate(x, t, *carry)

        lacc, pacc = lax.fori_loop(0, n_groups, group, (zeros8, zeros8),
                                   unroll=n_groups <= 8)
        loss_out_ref[...] = lacc
        pos_out_ref[...] = pacc

    if last_tile_valid_rows == tm:
        # Every block is full: single straight-line path, no masking at all.
        full_block()
    else:
        last = pl.num_programs(0) - 1

        @pl.when(pl.program_id(0) != last)
        def _():
            full_block()

        @pl.when(pl.program_id(0) == last)
        def _():
            # Static (trace-time) loop: only the groups overlapping valid rows
            # are touched; at most one group needs the iota row-mask.
            lacc, pacc = zeros8, zeros8
            n_valid_groups = -(-last_tile_valid_rows // rowg)
            for g in range(n_valid_groups):
                x, t = load(g * rowg)
                vrows = last_tile_valid_rows - g * rowg
                if vrows < rowg:
                    rid = lax.broadcasted_iota(jnp.int32, (rowg, LANE), 0)
                    valid = rid < vrows
                    x = jnp.where(valid, x, _SENTINEL)  # exactly zero loss
                    t = jnp.where(valid, t, 0.0)        # zero positives
                lacc, pacc = accumulate(x, t, lacc, pacc)
            loss_out_ref[...] = lacc
            pos_out_ref[...] = pacc


def focal_loss(pred, target, mask=None, *, alpha=0.25, gamma=2.0,
               loss_weight=2.0):
    """Pallas TPU implementation of FocalLoss.forward (mask=None path)."""
    # TODO(synk): boolean-mask indexing (pred[mask]) produces a data-dependent
    # shape; it has no clean static-shape Pallas equivalent and is not handled.
    assert mask is None, "mask indexing not supported in the Pallas kernel"

    # Keep targets in their native narrow dtype: the kernel casts to f32
    # in-register, so no f32 upcast / extra HBM traffic in the wrapper.
    if target.dtype == jnp.bool_:
        target = target.astype(jnp.int8)

    n = pred.size
    p = pred.reshape(-1)
    t = target.reshape(-1)

    if n % LANE != 0:
        # Rare ragged-lane tail: pad to the next lane multiple with sentinels
        # (zero loss, zero positives).
        # TODO(synk): this concatenate still copies the whole tensor; a tiny
        # second pallas_call on the <128-element tail would avoid it.
        npad = LANE - n % LANE
        p = jnp.concatenate([p, jnp.full((npad,), _SENTINEL, dtype=p.dtype)])
        t = jnp.concatenate([t, jnp.zeros((npad,), dtype=t.dtype)])

    rows = p.size // LANE
    p = p.reshape(rows, LANE)
    t = t.reshape(rows, LANE)

    # Row alignment: 32 for 8-bit inputs, 16 otherwise (covers bf16 packing).
    row_align = 32 if min(p.dtype.itemsize, t.dtype.itemsize) == 1 else 16

    # Adaptive block height: large blocks amortize the ~0.35us grid-step
    # overhead; mid-size inputs get >=2 balanced blocks for v7x megacore.
    if rows <= ROWG:
        tm = _round_up(rows, row_align)
        rowg = tm
    else:
        tm = min(MAX_TM, _round_up(rows, ROWG))
        if tm >= rows:                           # would be one giant block
            tm = _round_up(-(-rows // 2), ROWG)  # prefer two balanced blocks
        rowg = ROWG
    n_tiles = -(-rows // tm)
    last_tile_valid_rows = rows - (n_tiles - 1) * tm

    kernel = functools.partial(
        _focal_loss_partials_kernel, alpha=float(alpha), gamma=float(gamma),
        rowg=rowg, last_tile_valid_rows=last_tile_valid_rows)

    loss_parts, pos_parts = pl.pallas_call(
        kernel,
        out_shape=(
            jax.ShapeDtypeStruct((n_tiles * 8, LANE), jnp.float32),
            jax.ShapeDtypeStruct((n_tiles * 8, LANE), jnp.float32),
        ),
        grid=(n_tiles,),
        in_specs=[
            pl.BlockSpec((tm, LANE), lambda i: (i, 0)),
            pl.BlockSpec((tm, LANE), lambda i: (i, 0)),
        ],
        out_specs=(
            pl.BlockSpec((8, LANE), lambda i: (i, 0)),
            pl.BlockSpec((8, LANE), lambda i: (i, 0)),
        ),
        compiler_params=pltpu.CompilerParams(
            dimension_semantics=("parallel",),        # both TCs on v7x
            vmem_limit_bytes=48 * 1024 * 1024,        # clears v5e's 16MiB default,
        ),                                            # well under v7x's 64MiB
    )(p, t)

    # Tiny final reduce + normalize in the wrapper.
    loss_sum = jnp.sum(loss_parts)
    pos_sum = jnp.sum(pos_parts)
    # Note: divides by zero (inf/nan) when there are no positive targets —
    # this matches the PyTorch reference behavior.
    return loss_sum / pos_sum * loss_weight


def focal_loss_ref(pred, target, *, alpha=0.25, gamma=2.0, loss_weight=2.0):
    """Pure-JAX reference mirroring the PyTorch module."""
    pred = pred.astype(jnp.float32)
    target = target.astype(jnp.float32)
    sig = jax.nn.sigmoid(pred)
    pt = (1 - sig) * target + sig * (1 - target)
    fw = (alpha * target + (1 - alpha) * (1 - target)) * pt ** gamma
    bce = jnp.maximum(pred, 0) - pred * target + jnp.log1p(jnp.exp(-jnp.abs(pred)))
    loss = (bce * fw).sum() / (target > 0).sum()
    return loss * loss_weight


if __name__ == "__main__":
    key = jax.random.PRNGKey(0)

    # Primary check: typical NCHW detector-head shape (tile-aligned, one block).
    k1, k2 = jax.random.split(key)
    pred = jax.random.normal(k1, (2, 4, 16, 16), dtype=jnp.float32)
    target = (jax.random.uniform(k2, (2, 4, 16, 16)) > 0.7).astype(jnp.float32)
    out = jax.block_until_ready(focal_loss(pred, target))
    ref = focal_loss_ref(pred, target)
    assert jnp.allclose(out, ref, rtol=1e-5, atol=1e-5), (out, ref)

    # Partial last block (rows not a multiple of the block height): exercises
    # the in-kernel row masking instead of a wrapper-side pad copy.
    k3, k4 = jax.random.split(k1)
    pred2 = jax.random.normal(k3, (3, 5, 8, 16), dtype=jnp.float32)
    target2 = (jax.random.uniform(k4, (3, 5, 8, 16)) > 0.7).astype(jnp.float32)
    out2 = jax.block_until_ready(focal_loss(pred2, target2))
    ref2 = focal_loss_ref(pred2, target2)
    assert jnp.allclose(out2, ref2, rtol=1e-5, atol=1e-5), (out2, ref2)

    # Multi-block grid (two full blocks) with targets kept in narrow int8.
    k5, k6 = jax.random.split(k2)
    pred3 = jax.random.normal(k5, (2, 16, 64, 64), dtype=jnp.float32)
    target3 = (jax.random.uniform(k6, (2, 16, 64, 64)) > 0.7).astype(jnp.int8)
    out3 = jax.block_until_ready(focal_loss(pred3, target3))
    ref3 = focal_loss_ref(pred3, target3)
    assert jnp.allclose(out3, ref3, rtol=1e-5, atol=1e-5), (out3, ref3)

    print("KERNEL_OK")
</pallas_src>

<mosaic_0001>
module attributes {stable_mosaic.version = 11 : i64} {
  func.func @_focal_loss_partials_kernel(%arg0: i32, %arg1: memref<16x128xf32, #tpu.memory_space<vmem>>, %arg2: memref<16x128xf32, #tpu.memory_space<vmem>>, %arg3: memref<8x128xf32, #tpu.memory_space<vmem>>, %arg4: memref<8x128xf32, #tpu.memory_space<vmem>>) attributes {dimension_semantics = [#tpu.dimension_semantics<parallel>], iteration_bounds = array<i64: 1>, scalar_prefetch = 0 : i64, scratch_operands = 0 : i64, tpu.core_type = #tpu.core_type<tc>, window_params = [{transform_indices = @transform_0, window_bounds = array<i64: 16, 128>}, {transform_indices = @transform_1, window_bounds = array<i64: 16, 128>}, {transform_indices = @transform_2, window_bounds = array<i64: 8, 128>}, {transform_indices = @transform_3, window_bounds = array<i64: 8, 128>}]} {
    %cst = arith.constant 0.000000e+00 : f32
    %0 = vector.broadcast %cst : f32 to vector<8x128xf32>
    %c0_i32 = arith.constant 0 : i32
    %c16_i32 = arith.constant 16 : i32
    %1 = arith.muli %c0_i32, %c16_i32 : i32
    %2 = tpu.assume_multiple %1, 16 : i32
    %3 = arith.index_cast %2 : i32 to index
    %c0 = arith.constant 0 : index
    %4 = vector.load %arg1[%3, %c0] : memref<16x128xf32, #tpu.memory_space<vmem>>, vector<16x128xf32>
    %5 = arith.index_cast %2 : i32 to index
    %c0_0 = arith.constant 0 : index
    %6 = vector.load %arg2[%5, %c0_0] : memref<16x128xf32, #tpu.memory_space<vmem>>, vector<16x128xf32>
    %cst_1 = arith.constant 2.000000e+00 : f32
    %7 = vector.broadcast %cst_1 : f32 to vector<16x128xf32>
    %8 = arith.mulf %7, %6 : vector<16x128xf32>
    %cst_2 = arith.constant 1.000000e+00 : f32
    %9 = vector.broadcast %cst_2 : f32 to vector<16x128xf32>
    %10 = arith.subf %9, %8 : vector<16x128xf32>
    %11 = arith.mulf %4, %10 : vector<16x128xf32>
    %12 = math.absf %11 : vector<16x128xf32>
    %cst_3 = arith.constant 0.000000e+00 : f32
    %13 = vector.broadcast %cst_3 : f32 to vector<16x128xf32>
    %14 = arith.subf %13, %12 : vector<16x128xf32>
    %15 = math.exp %14 : vector<16x128xf32>
    %cst_4 = arith.constant 1.000000e+00 : f32
    %16 = vector.broadcast %cst_4 : f32 to vector<16x128xf32>
    %17 = arith.addf %16, %15 : vector<16x128xf32>
    %18 = tpu.reciprocal %17 {approx = true} : vector<16x128xf32> -> vector<16x128xf32>
    %19 = arith.mulf %17, %18 : vector<16x128xf32>
    %cst_5 = arith.constant 2.000000e+00 : f32
    %20 = vector.broadcast %cst_5 : f32 to vector<16x128xf32>
    %21 = arith.subf %20, %19 : vector<16x128xf32>
    %22 = arith.mulf %18, %21 : vector<16x128xf32>
    %cst_6 = arith.constant 0.000000e+00 : f32
    %23 = vector.broadcast %cst_6 : f32 to vector<16x128xf32>
    %24 = arith.cmpf oge, %11, %23 : vector<16x128xf32>
    %25 = arith.mulf %15, %22 : vector<16x128xf32>
    %26 = arith.select %24, %22, %25 : vector<16x128xi1>, vector<16x128xf32>
    %27 = arith.mulf %26, %26 : vector<16x128xf32>
    %cst_7 = arith.constant -5.000000e-01 : f32
    %28 = vector.broadcast %cst_7 : f32 to vector<16x128xf32>
    %29 = arith.mulf %28, %6 : vector<16x128xf32>
    %cst_8 = arith.constant 7.500000e-01 : f32
    %30 = vector.broadcast %cst_8 : f32 to vector<16x128xf32>
    %31 = arith.addf %30, %29 : vector<16x128xf32>
    %32 = arith.mulf %31, %27 : vector<16x128xf32>
    %cst_9 = arith.constant 0.000000e+00 : f32
    %33 = vector.broadcast %cst_9 : f32 to vector<16x128xf32>
    %34 = arith.maximumf %11, %33 : vector<16x128xf32>
    %35 = math.log1p %15 : vector<16x128xf32>
    %36 = arith.addf %34, %35 : vector<16x128xf32>
    %37 = arith.mulf %36, %32 : vector<16x128xf32>
    %cst_10 = arith.constant 0.000000e+00 : f32
    %38 = vector.broadcast %cst_10 : f32 to vector<16x128xf32>
    %39 = arith.cmpf ogt, %6, %38 : vector<16x128xf32>
    %40 = arith.extui %39 : vector<16x128xi1> to vector<16x128xi32>
    %41 = arith.sitofp %40 : vector<16x128xi32> to vector<16x128xf32>
    %42 = vector.shape_cast %37 : vector<16x128xf32> to vector<2x8x128xf32>
    %cst_11 = arith.constant dense<0.000000e+00> : vector<8x128xf32>
    %43 = vector.multi_reduction <add>, %42, %cst_11 [0] : vector<2x8x128xf32> to vector<8x128xf32>
    %44 = arith.addf %0, %43 : vector<8x128xf32>
    %45 = vector.shape_cast %41 : vector<16x128xf32> to vector<2x8x128xf32>
    %cst_12 = arith.constant dense<0.000000e+00> : vector<8x128xf32>
    %46 = vector.multi_reduction <add>, %45, %cst_12 [0] : vector<2x8x128xf32> to vector<8x128xf32>
    %47 = arith.addf %0, %46 : vector<8x128xf32>
    %c1_i32 = arith.constant 1 : i32
    %c0_13 = arith.constant 0 : index
    %c0_14 = arith.constant 0 : index
    %48 = vector.load %arg3[%c0_13, %c0_14] : memref<8x128xf32, #tpu.memory_space<vmem>>, vector<8x128xf32>
    tpu.vector_store %arg3[%c0_13, %c0_14], %44 {strides = array<i32>} : memref<8x128xf32, #tpu.memory_space<vmem>>, vector<8x128xf32>,
    %c0_15 = arith.constant 0 : index
    %c0_16 = arith.constant 0 : index
    %49 = vector.load %arg4[%c0_15, %c0_16] : memref<8x128xf32, #tpu.memory_space<vmem>>, vector<8x128xf32>
    tpu.vector_store %arg4[%c0_15, %c0_16], %47 {strides = array<i32>} : memref<8x128xf32, #tpu.memory_space<vmem>>, vector<8x128xf32>,
    return
  }
  func.func @transform_0(%arg0: i32) -> (i32, i32) {
    %c0_i32 = arith.constant 0 : i32
    %c0_i32_0 = arith.constant 0 : i32
    return %arg0, %c0_i32 : i32, i32
  }
  func.func @transform_1(%arg0: i32) -> (i32, i32) {
    %c0_i32 = arith.constant 0 : i32
    %c0_i32_0 = arith.constant 0 : i32
    return %arg0, %c0_i32 : i32, i32
  }
  func.func @transform_2(%arg0: i32) -> (i32, i32) {
    %c0_i32 = arith.constant 0 : i32
    %c0_i32_0 = arith.constant 0 : i32
    return %arg0, %c0_i32 : i32, i32
  }
  func.func @transform_3(%arg0: i32) -> (i32, i32) {
    %c0_i32 = arith.constant 0 : i32
    %c0_i32_0 = arith.constant 0 : i32
    return %arg0, %c0_i32 : i32, i32
  }
}

</mosaic_0001>

<llo_original>
// kernel: tpu_custom_call.1
$region0: #{tpu_custom_call.1}
  #allocation0 [shape = 'u32[]', space=smem, size = 0x4, offset = 0x4, fixed_abs, tag = 'smem constant byte address 0x4 - core index']
  #allocation1 [shape = 'u32[72,128]{1,0:T(1,128)}', space=vmem, size = 0x9000, scoped, tag = 'internal scratch']
  %s0 = inlined_call_operand.hbm [shape: f32[16,128], index: 0, kind: input, shape index: {}]
  %s1 = inlined_call_operand.hbm [shape: f32[16,128], index: 1, kind: input, shape index: {}]
  %s2 = inlined_call_operand.hbm [shape: f32[8,128], index: 2, kind: output, shape index: {0}]
  %s3 = inlined_call_operand.hbm [shape: f32[8,128], index: 3, kind: output, shape index: {1}]
  %4 = xla_tuple %s2, %s3
  %s5 = sld [smem:[#allocation0]]
  $region34: #{tpu_custom_call.1} parent=0
    _
  %s7 = ssub.s32 1, %s5
  %s8 = scalar_select 0, %s7, %s5
  $region1: #{tpu_custom_call.1} parent=0
    #allocation2 [shape = 'u8[8192]{0}', space=vmem, size = 0x2000, scoped, tag = 'input window, operand 0, single buffered']
    #allocation3 [shape = 's32[1]{0}', space=sflag, size = 0x4, scoped, tag = 'scoped memory for tpu_custom_call.1']
    #allocation4 [shape = 's32[1]{0}', space=sflag, size = 0x4, scoped, tag = 'scoped memory for tpu_custom_call.1']
    #allocation5 [shape = 'u8[8192]{0}', space=vmem, size = 0x2000, scoped, tag = 'input window, operand 1, single buffered']
    #allocation6 [shape = 's32[1]{0}', space=sflag, size = 0x4, scoped, tag = 'scoped memory for tpu_custom_call.1']
    #allocation7 [shape = 'u8[4096]{0}', space=vmem, size = 0x1000, scoped, tag = 'output window, operand 0, single buffered']
    #allocation8 [shape = 'u8[4096]{0}', space=vmem, size = 0x1000, scoped, tag = 'output window, operand 1, single buffered']
    #allocation9 [shape = 's32[1]{0}', space=sflag, size = 0x4, scoped, tag = 'scoped memory for tpu_custom_call.1']
    %9 = vsyncpa [#allocation3], 0
    %10 = vsyncpa [#allocation6], 0
    %11 = vsyncpa [#allocation4], 0
    %12 = vsyncpa [#allocation9], 0
    // Predicated region
    $region2: #{tpu_custom_call.1} parent=1 // pred_check
      _
    $region3: #{tpu_custom_call.1} parent=1 // pred_check_branch
      %14 = sbr.rel (0) target = $region5
    $region4: #{tpu_custom_call.1} parent=1 // pred_region
      %16 = vsyncadd [#allocation3], 0
      %s17 = sshll.u32 %s0, 4
      %s18 = int_to_ptr.hbm [resolvable:$true] %s17
      %s19 = sshll.u32 [#allocation2], 4
      %s20 = int_to_ptr.vmem [resolvable:$true] %s19
      %25 = dma.hbm_to_vmem [thread:$0]  %s18, 256, %s20, [#allocation3], 128, 128, 8
    $region5: #{tpu_custom_call.1} parent=1 // pred_fallthru
      _
    // Predicated region
    $region6: #{tpu_custom_call.1} parent=1 // pred_check
      _
    $region7: #{tpu_custom_call.1} parent=1 // pred_check_branch
      %27 = sbr.rel (0) target = $region9
    $region8: #{tpu_custom_call.1} parent=1 // pred_region
      %29 = vsyncadd [#allocation6], 0
      %s30 = sshll.u32 %s1, 4
      %s31 = int_to_ptr.hbm [resolvable:$true] %s30
      %s32 = sshll.u32 [#allocation5], 4
      %s33 = int_to_ptr.vmem [resolvable:$true] %s32
      %38 = dma.hbm_to_vmem [thread:$0]  %s31, 256, %s33, [#allocation6], 128, 128, 8
    $region9: #{tpu_custom_call.1} parent=1 // pred_fallthru
      _
    // Predicated region
    $region10: #{tpu_custom_call.1} parent=1 // pred_check
      _
    $region11: #{tpu_custom_call.1} parent=1 // pred_check_branch
      %40 = sbr.rel (0) target = $region13
    $region12: #{tpu_custom_call.1} parent=1 // pred_region
      %42 = dma.done [#allocation3], 256
    $region13: #{tpu_custom_call.1} parent=1 // pred_fallthru
      _
    // Predicated region
    $region14: #{tpu_custom_call.1} parent=1 // pred_check
      _
    $region15: #{tpu_custom_call.1} parent=1 // pred_check_branch
      %44 = sbr.rel (0) target = $region17
    $region16: #{tpu_custom_call.1} parent=1 // pred_region
      %46 = dma.done [#allocation6], 256
    $region17: #{tpu_custom_call.1} parent=1 // pred_fallthru
      _
    %v47 = vld [vmem:[#allocation2] sm:$0xff]
    %v48 = vld [vmem:[#allocation2 + $0x8] sm:$0xff]
    %v49 = vld [vmem:[#allocation5] sm:$0xff]
    %v50 = vld [vmem:[#allocation5 + $0x8] sm:$0xff]
    %v51 = vmul.f32 %v49, 2.0
    %v52 = vmul.f32 %v50, 2.0
    %v53 = vsub.f32 1.0, %v51
    %v54 = vsub.f32 1.0, %v52
    %v55 = vmul.f32 %v47, %v53
    %v56 = vmul.f32 %v48, %v54
    %v57 = vand.u32 2147483647, %v55
    %v58 = vand.u32 2147483647, %v56
    %v59 = vsub.f32 0.0, %v57
    %v60 = vsub.f32 0.0, %v58
    %v61 = vmul.f32 %v59, 1.442695
    %v62 = vpow.pop %v61
    %v63 = vmul.f32 %v60, 1.442695
    %v64 = vpow.pop %v63
    %v65 = vadd.f32 %v62, 1.0
    %v66 = vadd.f32 %v64, 1.0
    %v67 = vrcp.pop %v65
    %v68 = vrcp.pop %v66
    %v69 = vmul.f32 %v65, %v67
    %v70 = vmul.f32 %v66, %v68
    %v71 = vsub.f32 2.0, %v69
    %v72 = vsub.f32 2.0, %v70
    %v73 = vmul.f32 %v67, %v71
    %v74 = vmul.f32 %v68, %v72
    %vm75 = vcmp.ge.f32.partialorder %v55, 0.0
    %vm76 = vcmp.ge.f32.partialorder %v56, 0.0
    %v77 = vmul.f32 %v62, %v73
    %v78 = vmul.f32 %v64, %v74
    %v79 = vsel %vm75, %v73, %v77
    %v80 = vsel %vm76, %v74, %v78
    %v81 = vmul.f32 %v79, %v79
    %v82 = vmul.f32 %v80, %v80
    %v83 = vmul.f32 %v49, -0.5
    %v84 = vmul.f32 %v50, -0.5
    %v85 = vadd.f32 %v83, 0.75
    %v86 = vadd.f32 %v84, 0.75
    %v87 = vmul.f32 %v85, %v81
    %v88 = vmul.f32 %v86, %v82
    %v89 = vmax.f32 %v55, 0.0
    %v90 = vmax.f32 %v56, 0.0
    %v91 = vadd.f32 %v62, 1.0
    %v92 = vlog2.pop %v91
    %v93 = vmul.f32 %v92, 0.6931472
    %v94 = vmul.f32 -0.5, %v62
    %v95 = vadd.f32 %v94, 1.0
    %v96 = vmul.f32 %v95, %v62
    %v97 = vand.u32 2147483647, %v62
    %vm98 = vcmp.lt.f32.partialorder %v97, 0.0004427343
    %v99 = vsel %vm98, %v96, %v93
    %v100 = vadd.f32 %v64, 1.0
    %v101 = vlog2.pop %v100
    %v102 = vmul.f32 %v101, 0.6931472
    %v103 = vmul.f32 -0.5, %v64
    %v104 = vadd.f32 %v103, 1.0
    %v105 = vmul.f32 %v104, %v64
    %v106 = vand.u32 2147483647, %v64
    %vm107 = vcmp.lt.f32.partialorder %v106, 0.0004427343
    %v108 = vsel %vm107, %v105, %v102
    %v109 = vadd.f32 %v89, %v99
    %v110 = vadd.f32 %v90, %v108
    %v111 = vmul.f32 %v109, %v87
    %v112 = vmul.f32 %v110, %v88
    %vm113 = vcmp.gt.f32.partialorder %v49, 0.0
    %vm114 = vcmp.gt.f32.partialorder %v50, 0.0
    %v115 = vsel %vm113, 1, 0
    %v116 = vsel %vm114, 1, 0
    %v117 = vcvt.s32.f32 %v115
    %v118 = vcvt.s32.f32 %v116
    %v119 = vadd.f32 %v111, %v112
    %v120 = vadd.f32 %v119, 0.0
    %v121 = vadd.f32 %v117, %v118
    %v122 = vadd.f32 %v121, 0.0
    %123 = vst [vmem:[#allocation7] sm:$0xff] %v120
    %124 = vst [vmem:[#allocation8] sm:$0xff] %v122
    // Predicated region
    $region18: #{tpu_custom_call.1} parent=1 // pred_check
      _
    $region19: #{tpu_custom_call.1} parent=1 // pred_check_branch
      %126 = sbr.rel (0) target = $region21
    $region20: #{tpu_custom_call.1} parent=1 // pred_region
      %128 = vsyncadd [#allocation4], 0
      %s130 = sshll.u32 [#allocation7], 4
      %s131 = int_to_ptr.vmem [resolvable:$true] %s130
      %s132 = sshll.u32 %s2, 4
      %s133 = int_to_ptr.hbm [resolvable:$true] %s132
      %135 = dma.vmem_to_hbm [thread:$0]  %s131, 128, %s133, [#allocation4]
    $region21: #{tpu_custom_call.1} parent=1 // pred_fallthru
      _
    // Predicated region
    $region22: #{tpu_custom_call.1} parent=1 // pred_check
      _
    $region23: #{tpu_custom_call.1} parent=1 // pred_check_branch
      %137 = sbr.rel (0) target = $region25
    $region24: #{tpu_custom_call.1} parent=1 // pred_region
      %139 = vsyncadd [#allocation9], 0
      %s141 = sshll.u32 [#allocation8], 4
      %s142 = int_to_ptr.vmem [resolvable:$true] %s141
      %s143 = sshll.u32 %s3, 4
      %s144 = int_to_ptr.hbm [resolvable:$true] %s143
      %146 = dma.vmem_to_hbm [thread:$0]  %s142, 128, %s144, [#allocation9]
    $region25: #{tpu_custom_call.1} parent=1 // pred_fallthru
      _
    // Predicated region
    $region26: #{tpu_custom_call.1} parent=1 // pred_check
      _
    $region27: #{tpu_custom_call.1} parent=1 // pred_check_branch
      %148 = sbr.rel (0) target = $region29
    $region28: #{tpu_custom_call.1} parent=1 // pred_region
      %150 = dma.done [#allocation4], 128
    $region29: #{tpu_custom_call.1} parent=1 // pred_fallthru
      _
    // Predicated region
    $region30: #{tpu_custom_call.1} parent=1 // pred_check
      _
    $region31: #{tpu_custom_call.1} parent=1 // pred_check_branch
      %152 = sbr.rel (0) target = $region33
    $region32: #{tpu_custom_call.1} parent=1 // pred_region
      %154 = dma.done [#allocation9], 128
    $region33: #{tpu_custom_call.1} parent=1 // pred_fallthru
      _
    %155 = vsyncpa [#allocation3], 1
    %156 = vsyncpa [#allocation6], 1
    %157 = vsyncpa [#allocation4], 1
    %158 = vsyncpa [#allocation9], 1

</llo_original>
